<compile_context>
chip_gen: v6e
topology: v6e:2x2x1
jax: 0.10.0
libtpu: 0.0.40
codegen_flags: <defaults>
</compile_context>

<pallas_src>
import jax
import jax.numpy as jnp
from jax.experimental import pallas as pl
from jax.experimental.pallas import tpu as pltpu


LANE = 128
SUBLANE = 8
MAX_BLOCK_ROWS = 4096   # (4096,128) f32 = 2 MiB/stream/buffer -> 8 MiB double-buffered.
SUB_ROWS_MAX = 512      # per-iteration sub-slab; caps live VMEM temporaries.
TARGET_BLOCKS = 4       # aim for >= 2 (ideally 4) grid steps for v7x megacore.


def _round_up(a, b):
    return -(-a // b) * b


def _row_multiple(dtype):
    """Sublane packing multiple: 8 rows for 32-bit, 16 for 16-bit, 32 for 8-bit."""
    return (SUBLANE * 4) // max(1, jnp.dtype(dtype).itemsize)


def _weighted_bce(x_raw, t_raw):
    """Weighted BCE values for one (rows, LANE) slab, f32.

    The negation and the per-element weight are folded into the coefficients
    of the two log terms:  weight*bce = a*log(x) + (w-a)*log(1-x)  with
    w = -weight, a = w*t   (saves ~3 VPU ops/element vs the naive form).
    """
    x = x_raw.astype(jnp.float32)
    t = t_raw.astype(jnp.float32)
    # nn.BCELoss clamps each log term at -100.  The clamp must happen BEFORE
    # the multiply so x=1, t=1 padding contributes exactly 0 (never 0*inf=NaN).
    log_x = jnp.maximum(jnp.log(x), jnp.float32(-100.0))
    log_1mx = jnp.maximum(jnp.log(1.0 - x), jnp.float32(-100.0))
    w = jnp.where(t > 0.0, jnp.float32(-1.7), jnp.float32(-0.9))
    a = w * t
    return a * log_x + (w - a) * log_1mx


def _fold_sublanes(vals):
    """(rows, LANE) -> (SUBLANE, LANE) via a vreg-tiling-preserving reshape,
    so the reduction is pure elementwise VPU adds (no cross-lane XLU work)."""
    rows = vals.shape[0]
    return vals.reshape(rows // SUBLANE, SUBLANE, LANE).sum(axis=0)


def _make_kernel(block_rows, sub_rows, last_valid_rows):
    """Kernel factory; all arguments are static Python ints."""
    n_sub = block_rows // sub_rows
    needs_mask = last_valid_rows < block_rows

    def slab_sum(x_ref, t_ref, s):
        base = pl.multiple_of(s * sub_rows, sub_rows)
        x = x_ref[pl.ds(base, sub_rows), :]
        t = t_ref[pl.ds(base, sub_rows), :]
        return _fold_sublanes(_weighted_bce(x, t))

    def accumulate(x_ref, t_ref, n):
        init = jnp.zeros((SUBLANE, LANE), jnp.float32)
        if n <= 0:
            return init
        return jax.lax.fori_loop(
            0, n, lambda s, acc: acc + slab_sum(x_ref, t_ref, s), init)

    def kernel(x_ref, t_ref, o_ref):
        if not needs_mask:
            # Every block is fully valid: one unmasked path for all steps.
            o_ref[...] = accumulate(x_ref, t_ref, n_sub)[None]
            return

        i = pl.program_id(0)
        last = pl.num_programs(0) - 1

        @pl.when(i != last)
        def _():
            o_ref[...] = accumulate(x_ref, t_ref, n_sub)[None]

        @pl.when(i == last)
        def _():
            # Only the statically-known first `last_valid_rows` rows of this
            # block hold real data; the DMA overhang is unspecified garbage,
            # masked out with a select (safe even if the garbage produces NaN).
            n_full = last_valid_rows // sub_rows
            rem = last_valid_rows - n_full * sub_rows
            acc = accumulate(x_ref, t_ref, n_full)
            if rem > 0:
                base = n_full * sub_rows  # static
                vals = _weighted_bce(x_ref[pl.ds(base, sub_rows), :],
                                     t_ref[pl.ds(base, sub_rows), :])
                row = jax.lax.broadcasted_iota(jnp.int32, (sub_rows, LANE), 0)
                vals = jnp.where(row < rem, vals, jnp.float32(0.0))
                acc = acc + _fold_sublanes(vals)
            o_ref[...] = acc[None]

    return kernel


def bce_loss_pallas(inputs, targets):
    """Weighted BCE loss (mean reduction) matching the PyTorch BCELoss module.

    inputs, targets: same-shape arrays (e.g. (N, C, H, W)), inputs in (0, 1).
    Returns a scalar float32.
    """
    assert inputs.shape == targets.shape
    n_elems = int(inputs.size)

    x_flat = inputs.reshape(-1)
    t_flat = targets.reshape(-1)

    # Lane alignment only (multiple of 128); a no-op for typical image sizes.
    lane_pad = (-n_elems) % LANE
    if lane_pad:
        # x=1, t=1 padding contributes exactly 0 to the weighted sum.
        # TODO(synk): this rare fallback copies both streams; an in-kernel
        # element-level tail mask on a 1D layout would avoid even this.
        x_flat = jnp.concatenate([x_flat, jnp.ones((lane_pad,), x_flat.dtype)])
        t_flat = jnp.concatenate([t_flat, jnp.ones((lane_pad,), t_flat.dtype)])
    rows_total = (n_elems + lane_pad) // LANE

    sub_mult = max(_row_multiple(x_flat.dtype), _row_multiple(t_flat.dtype))

    # Block size: big enough to amortize the ~0.35 us/step overhead, small
    # enough to stay inside v5e's 16 MiB default scoped VMEM when
    # double-buffered, and sized for >= 2 blocks so the "parallel" grid axis
    # can use both of v7x's TensorCores.
    rows_per_block = -(-rows_total // TARGET_BLOCKS)
    if rows_per_block <= SUB_ROWS_MAX:
        block_rows = _round_up(max(rows_per_block, 1), sub_mult)
    else:
        block_rows = min(MAX_BLOCK_ROWS, _round_up(rows_per_block, SUB_ROWS_MAX))
    sub_rows = min(SUB_ROWS_MAX, block_rows)
    grid = -(-rows_total // block_rows)
    last_valid_rows = rows_total - (grid - 1) * block_rows

    x2 = x_flat.reshape(rows_total, LANE)
    t2 = t_flat.reshape(rows_total, LANE)

    tile_spec = pl.BlockSpec((block_rows, LANE), lambda i: (i, 0))
    out_spec = pl.BlockSpec((1, SUBLANE, LANE), lambda i: (i, 0, 0))

    partials = pl.pallas_call(
        _make_kernel(block_rows, sub_rows, last_valid_rows),
        out_shape=jax.ShapeDtypeStruct((grid, SUBLANE, LANE), jnp.float32),
        grid_spec=pltpu.PrefetchScalarGridSpec(
            num_scalar_prefetch=0,
            grid=(grid,),
            in_specs=[tile_spec, tile_spec],
            out_specs=out_spec,
        ),
        compiler_params=pltpu.CompilerParams(
            dimension_semantics=("parallel",)),
    )(x2, t2)

    # Final reduction of the tiny (grid, 8, 128) partials + mean: plain JAX.
    return (jnp.sum(partials) / jnp.float32(n_elems)).astype(jnp.float32)


def _reference_loss(inputs, targets):
    """Pure-JAX reference mirroring the PyTorch module (for a sanity check)."""
    x = inputs.astype(jnp.float32)
    t = targets.astype(jnp.float32)
    log_x = jnp.maximum(jnp.log(x), -100.0)
    log_1mx = jnp.maximum(jnp.log(1.0 - x), -100.0)
    bce = -(t * log_x + (1.0 - t) * log_1mx)
    w = jnp.where(t > 0.0, 1.7, 0.9)
    return jnp.mean(bce * w)


if __name__ == "__main__":
    key = jax.random.PRNGKey(0)
    k1, k2 = jax.random.split(key)

    N, C, H, W = 2, 4, 16, 16
    # inputs: probabilities in (0, 1); targets: binary {0, 1} masks.
    inputs = jax.nn.sigmoid(jax.random.normal(k1, (N, C, H, W), dtype=jnp.float32))
    targets = (jax.random.uniform(k2, (N, C, H, W)) > 0.5).astype(jnp.float32)

    loss = jax.block_until_ready(bce_loss_pallas(inputs, targets))
    ref = jax.block_until_ready(_reference_loss(inputs, targets))

    assert jnp.allclose(loss, ref, rtol=1e-5, atol=1e-5), (loss, ref)
    print("KERNEL_OK")
</pallas_src>

<mosaic_0001>
module attributes {stable_mosaic.version = 11 : i64} {
  func.func @kernel(%arg0: i32, %arg1: memref<8x128xf32, #tpu.memory_space<vmem>>, %arg2: memref<8x128xf32, #tpu.memory_space<vmem>>, %arg3: memref<1x8x128xf32, #tpu.memory_space<vmem>>) attributes {dimension_semantics = [#tpu.dimension_semantics<parallel>], iteration_bounds = array<i64: 2>, scalar_prefetch = 0 : i64, scratch_operands = 0 : i64, tpu.core_type = #tpu.core_type<tc>, window_params = [{transform_indices = @transform_0, window_bounds = array<i64: 8, 128>}, {transform_indices = @transform_1, window_bounds = array<i64: 8, 128>}, {transform_indices = @transform_2, window_bounds = array<i64: 1, 8, 128>}]} {
    %cst = arith.constant 0.000000e+00 : f32
    %0 = vector.broadcast %cst : f32 to vector<8x128xf32>
    %c0_i32 = arith.constant 0 : i32
    %c8_i32 = arith.constant 8 : i32
    %1 = arith.muli %c0_i32, %c8_i32 : i32
    %2 = tpu.assume_multiple %1, 8 : i32
    %3 = arith.index_cast %2 : i32 to index
    %c0 = arith.constant 0 : index
    %4 = vector.load %arg1[%3, %c0] : memref<8x128xf32, #tpu.memory_space<vmem>>, vector<8x128xf32>
    %5 = arith.index_cast %2 : i32 to index
    %c0_0 = arith.constant 0 : index
    %6 = vector.load %arg2[%5, %c0_0] : memref<8x128xf32, #tpu.memory_space<vmem>>, vector<8x128xf32>
    %7 = math.log %4 : vector<8x128xf32>
    %cst_1 = arith.constant -1.000000e+02 : f32
    %8 = vector.broadcast %cst_1 : f32 to vector<8x128xf32>
    %9 = arith.maximumf %7, %8 : vector<8x128xf32>
    %cst_2 = arith.constant 1.000000e+00 : f32
    %10 = vector.broadcast %cst_2 : f32 to vector<8x128xf32>
    %11 = arith.subf %10, %4 : vector<8x128xf32>
    %12 = math.log %11 : vector<8x128xf32>
    %cst_3 = arith.constant -1.000000e+02 : f32
    %13 = vector.broadcast %cst_3 : f32 to vector<8x128xf32>
    %14 = arith.maximumf %12, %13 : vector<8x128xf32>
    %cst_4 = arith.constant 0.000000e+00 : f32
    %15 = vector.broadcast %cst_4 : f32 to vector<8x128xf32>
    %16 = arith.cmpf ogt, %6, %15 : vector<8x128xf32>
    %cst_5 = arith.constant -1.700000e+00 : f32
    %cst_6 = arith.constant -0.899999976 : f32
    %17 = vector.broadcast %cst_5 : f32 to vector<8x128xf32>
    %18 = vector.broadcast %cst_6 : f32 to vector<8x128xf32>
    %19 = arith.select %16, %17, %18 : vector<8x128xi1>, vector<8x128xf32>
    %20 = arith.mulf %19, %6 : vector<8x128xf32>
    %21 = arith.mulf %20, %9 : vector<8x128xf32>
    %22 = arith.subf %19, %20 : vector<8x128xf32>
    %23 = arith.mulf %22, %14 : vector<8x128xf32>
    %24 = arith.addf %21, %23 : vector<8x128xf32>
    %25 = vector.shape_cast %24 : vector<8x128xf32> to vector<1x8x128xf32>
    %cst_7 = arith.constant dense<0.000000e+00> : vector<8x128xf32>
    %26 = vector.multi_reduction <add>, %25, %cst_7 [0] : vector<1x8x128xf32> to vector<8x128xf32>
    %27 = arith.addf %0, %26 : vector<8x128xf32>
    %c1_i32 = arith.constant 1 : i32
    %28 = vector.shape_cast %27 : vector<8x128xf32> to vector<1x8x128xf32>
    %c0_8 = arith.constant 0 : index
    %c0_9 = arith.constant 0 : index
    %c0_10 = arith.constant 0 : index
    %29 = vector.load %arg3[%c0_8, %c0_9, %c0_10] : memref<1x8x128xf32, #tpu.memory_space<vmem>>, vector<1x8x128xf32>
    tpu.vector_store %arg3[%c0_8, %c0_9, %c0_10], %28 {strides = array<i32>} : memref<1x8x128xf32, #tpu.memory_space<vmem>>, vector<1x8x128xf32>,
    return
  }
  func.func @transform_0(%arg0: i32) -> (i32, i32) {
    %c0_i32 = arith.constant 0 : i32
    %c0_i32_0 = arith.constant 0 : i32
    return %arg0, %c0_i32 : i32, i32
  }
  func.func @transform_1(%arg0: i32) -> (i32, i32) {
    %c0_i32 = arith.constant 0 : i32
    %c0_i32_0 = arith.constant 0 : i32
    return %arg0, %c0_i32 : i32, i32
  }
  func.func @transform_2(%arg0: i32) -> (i32, i32, i32) {
    %c0_i32 = arith.constant 0 : i32
    %c0_i32_0 = arith.constant 0 : i32
    %c0_i32_1 = arith.constant 0 : i32
    return %arg0, %c0_i32, %c0_i32_0 : i32, i32, i32
  }
}

</mosaic_0001>

<llo_original>
// kernel: tpu_custom_call.1
$region0: #{tpu_custom_call.1}
  #allocation0 [shape = 'u32[]', space=smem, size = 0x4, offset = 0x4, fixed_abs, tag = 'smem constant byte address 0x4 - core index']
  #allocation1 [shape = 'u32[144,128]{1,0:T(1,128)}', space=vmem, size = 0x12000, scoped, tag = 'internal scratch']
  %s0 = inlined_call_operand.hbm [shape: f32[16,128], index: 0, kind: input, shape index: {}]
  %s1 = inlined_call_operand.hbm [shape: f32[16,128], index: 1, kind: input, shape index: {}]
  %s2 = inlined_call_operand.hbm [shape: f32[2,8,128], index: 2, kind: output, shape index: {}]
  %s3 = sld [smem:[#allocation0]]
  $region49: #{tpu_custom_call.1} parent=0
    _
  %s5 = ssub.s32 1, %s3
  %s6 = scalar_select 0, %s5, %s3
  $region1: #{tpu_custom_call.1} parent=0
    #allocation2 [shape = 'u8[8192]{0}', space=vmem, size = 0x2000, scoped, tag = 'input window, operand 0']
    #allocation3 [shape = 's32[2]{0}', space=sflag, size = 0x8, scoped, tag = 'scoped memory for tpu_custom_call.1']
    #allocation4 [shape = 's32[2]{0}', space=sflag, size = 0x8, scoped, tag = 'scoped memory for tpu_custom_call.1']
    #allocation5 [shape = 'u8[8192]{0}', space=vmem, size = 0x2000, scoped, tag = 'input window, operand 1']
    #allocation6 [shape = 's32[2]{0}', space=sflag, size = 0x8, scoped, tag = 'scoped memory for tpu_custom_call.1']
    #allocation7 [shape = 'u8[8192]{0}', space=vmem, size = 0x2000, scoped, tag = 'output window, operand 0']
    %7 = vsyncpa [#allocation3], 0
    %s8 = scalar_lea.sflag [#allocation3], 1
    %9 = vsyncpa %s8, 0
    %10 = vsyncpa [#allocation6], 0
    %s11 = scalar_lea.sflag [#allocation6], 1
    %12 = vsyncpa %s11, 0
    %13 = vsyncpa [#allocation4], 0
    %s14 = scalar_lea.sflag [#allocation4], 1
    %15 = vsyncpa %s14, 0
    loop: start=0, step=1, limit=4
    $region2: #{tpu_custom_call.1} parent=1 // loop_pre_header
      _
    $region3: #{tpu_custom_call.1} parent=1 // loop_header
      %s17 = sphi 0, %s21
      %p18 = scmp.ge.s32.totalorder %s17, 4
      %s27 = sphi 0, %s29
      %s30 = sphi 0, %s27
      %s31 = sphi 0, %s30
      %s47 = sphi 0, %s31
      %s53 = sphi 0, %s55
      %s56 = sphi 0, %s53
      %s57 = sphi 0, %s56
      %s73 = sphi 0, %s57
      %s79 = sphi 0, %s81
      %s82 = sphi 0, %s79
      %s83 = sphi 0, %s82
      %s99 = sphi 0, %s83
    $region4: #{tpu_custom_call.1} parent=1 // loop_header_branch
      %20 = sbr.rel (%p18) target = $region8
    $region5: #{tpu_custom_call.1} parent=1 // loop_body
      %s22 = ssub.s32 %s17, 1
      %s23 = ssub.s32 %s17, 2
      %s24 = sadd.s32 %s17, 1
      %s25 = ssub.s32 %s17, %s24
      %p26 = scmp.eq.s32.totalorder %s25, 0
      %s28 = sadd.s32 %s27, 1
      %s29 = scalar_select %p26, %s27, %s28
      %p32 = pneg %p26
      %p33 = scmp.eq.s32.totalorder %s17, 1
      %p34 = por %p32, %p33
      %p35 = scmp.ne.s32.totalorder %s27, %s30
      %p36 = scmp.eq.s32.totalorder %s17, 0
      %p37 = por %p35, %p36
      %p38 = scmp.ne.s32.totalorder %s27, %s30
      %p39 = scmp.eq.s32.totalorder %s22, 1
      %p40 = por %p38, %p39
      %p41 = scmp.ne.s32.totalorder %s30, %s31
      %p42 = scmp.eq.s32.totalorder %s22, 0
      %p43 = por %p41, %p42
      %p44 = scmp.ne.s32.totalorder %s30, %s31
      %p45 = scmp.eq.s32.totalorder %s23, 1
      %p46 = por %p44, %p45
      %p48 = scmp.ne.s32.totalorder %s31, %s47
      %p49 = scmp.eq.s32.totalorder %s23, 0
      %p50 = por %p48, %p49
      %s51 = ssub.s32 %s17, %s24
      %p52 = scmp.eq.s32.totalorder %s51, 0
      %s54 = sadd.s32 %s53, 1
      %s55 = scalar_select %p52, %s53, %s54
      %p58 = pneg %p52
      %p59 = scmp.eq.s32.totalorder %s17, 1
      %p60 = por %p58, %p59
      %p61 = scmp.ne.s32.totalorder %s53, %s56
      %p62 = scmp.eq.s32.totalorder %s17, 0
      %p63 = por %p61, %p62
      %p64 = scmp.ne.s32.totalorder %s53, %s56
      %p65 = scmp.eq.s32.totalorder %s22, 1
      %p66 = por %p64, %p65
      %p67 = scmp.ne.s32.totalorder %s56, %s57
      %p68 = scmp.eq.s32.totalorder %s22, 0
      %p69 = por %p67, %p68
      %p70 = scmp.ne.s32.totalorder %s56, %s57
      %p71 = scmp.eq.s32.totalorder %s23, 1
      %p72 = por %p70, %p71
      %p74 = scmp.ne.s32.totalorder %s57, %s73
      %p75 = scmp.eq.s32.totalorder %s23, 0
      %p76 = por %p74, %p75
      %s77 = ssub.s32 %s17, %s24
      %p78 = scmp.eq.s32.totalorder %s77, 0
      %s80 = sadd.s32 %s79, 1
      %s81 = scalar_select %p78, %s79, %s80
      %p84 = pneg %p78
      %p85 = scmp.eq.s32.totalorder %s17, 1
      %p86 = por %p84, %p85
      %p87 = scmp.ne.s32.totalorder %s79, %s82
      %p88 = scmp.eq.s32.totalorder %s17, 0
      %p89 = por %p87, %p88
      %p90 = scmp.ne.s32.totalorder %s79, %s82
      %p91 = scmp.eq.s32.totalorder %s22, 1
      %p92 = por %p90, %p91
      %p93 = scmp.ne.s32.totalorder %s82, %s83
      %p94 = scmp.eq.s32.totalorder %s22, 0
      %p95 = por %p93, %p94
      %p96 = scmp.ne.s32.totalorder %s82, %s83
      %p97 = scmp.eq.s32.totalorder %s23, 1
      %p98 = por %p96, %p97
      %p100 = scmp.ne.s32.totalorder %s83, %s99
      %p101 = scmp.eq.s32.totalorder %s23, 0
      %p102 = por %p100, %p101
      %p103 = scmp.le.s32.totalorder 1, %s17
      %p104 = scmp.lt.s32.totalorder %s17, 3
      %p105 = pnand %p103, %p104
      %p106 = pneg %p105
      // Predicated region
      $region9: #{tpu_custom_call.1} parent=5 // pred_check
        _
      $region10: #{tpu_custom_call.1} parent=5 // pred_check_branch
        %108 = sbr.rel (%p105) target = $region12
      $region11: #{tpu_custom_call.1} parent=5 // pred_region
        %s109 = ssub.s32 %s17, 1
      $region12: #{tpu_custom_call.1} parent=5 // pred_fallthru
        _
      %p110 = scmp.lt.s32.totalorder %s17, 2
      // Predicated region
      $region13: #{tpu_custom_call.1} parent=5 // pred_check
        %p111 = pneg %p110
      $region14: #{tpu_custom_call.1} parent=5 // pred_check_branch
        %113 = sbr.rel (%p111) target = $region16
      $region15: #{tpu_custom_call.1} parent=5 // pred_region
        // Predicated region
        $region17: #{tpu_custom_call.1} parent=15 // pred_check
          %p114 = pneg %p37
        $region18: #{tpu_custom_call.1} parent=15 // pred_check_branch
          %116 = sbr.rel (%p114) target = $region20
        $region19: #{tpu_custom_call.1} parent=15 // pred_region
          %s117 = sand.u32 %s27, 1
          %s118 = scalar_lea.sflag [#allocation3], %s117
          %s119 = sand.u32 %s27, 1
          %s120 = smul.addr %s119, 8
          %s121 = scalar_lea.vmem [#allocation2], %s120
          %s123 = ssub.s32 128, 128
          %124 = vsyncadd %s118, %s123
          %s125 = smul.addr %s17, 128
          %s126 = scalar_lea.hbm %s0, %s125
          %s128 = sshll.u32 %s121, 4
          %s129 = int_to_ptr.vmem [resolvable:$true] %s128
          %131 = dma.hbm_to_vmem [thread:$0]  %s126, 128, %s129, %s118
        $region20: #{tpu_custom_call.1} parent=15 // pred_fallthru
          _
        // Predicated region
        $region21: #{tpu_custom_call.1} parent=15 // pred_check
          %p132 = pneg %p63
        $region22: #{tpu_custom_call.1} parent=15 // pred_check_branch
          %134 = sbr.rel (%p132) target = $region24
        $region23: #{tpu_custom_call.1} parent=15 // pred_region
          %s135 = sand.u32 %s53, 1
          %s136 = scalar_lea.sflag [#allocation6], %s135
          %s137 = sand.u32 %s53, 1
          %s138 = smul.addr %s137, 8
          %s139 = scalar_lea.vmem [#allocation5], %s138
          %s141 = ssub.s32 128, 128
          %142 = vsyncadd %s136, %s141
          %s143 = smul.addr %s17, 128
          %s144 = scalar_lea.hbm %s1, %s143
          %s146 = sshll.u32 %s139, 4
          %s147 = int_to_ptr.vmem [resolvable:$true] %s146
          %149 = dma.hbm_to_vmem [thread:$0]  %s144, 128, %s147, %s136
        $region24: #{tpu_custom_call.1} parent=15 // pred_fallthru
          _
      $region16: #{tpu_custom_call.1} parent=5 // pred_fallthru
        _
      %p150 = scmp.le.s32.totalorder 1, %s17
      %p151 = scmp.lt.s32.totalorder %s17, 3
      %p152 = pnand %p150, %p151
      %p153 = pneg %p152
      // Predicated region
      $region25: #{tpu_custom_call.1} parent=5 // pred_check
        _
      $region26: #{tpu_custom_call.1} parent=5 // pred_check_branch
        %155 = sbr.rel (%p152) target = $region28
      $region27: #{tpu_custom_call.1} parent=5 // pred_region
        %s156 = ssub.s32 %s17, 1
        %s157 = sand.u32 %s30, 1
        %s158 = scalar_lea.sflag [#allocation3], %s157
        %s159 = sand.u32 %s30, 1
        %s160 = smul.addr %s159, 8
        %s161 = scalar_lea.vmem [#allocation2], %s160
        // Predicated region
        $region29: #{tpu_custom_call.1} parent=27 // pred_check
          %p162 = pneg %p43
        $region30: #{tpu_custom_call.1} parent=27 // pred_check_branch
          %164 = sbr.rel (%p162) target = $region32
        $region31: #{tpu_custom_call.1} parent=27 // pred_region
          %165 = dma.done %s158, 128
        $region32: #{tpu_custom_call.1} parent=27 // pred_fallthru
          _
        %s166 = sand.u32 %s56, 1
        %s167 = scalar_lea.sflag [#allocation6], %s166
        %s168 = sand.u32 %s56, 1
        %s169 = smul.addr %s168, 8
        %s170 = scalar_lea.vmem [#allocation5], %s169
        // Predicated region
        $region33: #{tpu_custom_call.1} parent=27 // pred_check
          %p171 = pneg %p69
        $region34: #{tpu_custom_call.1} parent=27 // pred_check_branch
          %173 = sbr.rel (%p171) target = $region36
        $region35: #{tpu_custom_call.1} parent=27 // pred_region
          %174 = dma.done %s167, 128
        $region36: #{tpu_custom_call.1} parent=27 // pred_fallthru
          _
        %s175 = sand.u32 %s30, 1
        %s176 = scalar_lea.sflag [#allocation3], %s175
        %s177 = sand.u32 %s30, 1
        %s178 = smul.addr %s177, 8
        %s179 = scalar_lea.vmem [#allocation2], %s178
        %p180 = pneg %p43
        %p181 = pneg %p40
        %s182 = sand.u32 %s56, 1
        %s183 = scalar_lea.sflag [#allocation6], %s182
        %s184 = sand.u32 %s56, 1
        %s185 = smul.addr %s184, 8
        %s186 = scalar_lea.vmem [#allocation5], %s185
        %p187 = pneg %p69
        %p188 = pneg %p66
        %p189 = pneg %p95
        %p190 = pneg %p92
        %s191 = sand.u32 %s82, 1
        %s192 = scalar_lea.sflag [#allocation4], %s191
        %s193 = sand.u32 %s82, 1
        %s194 = smul.addr %s193, 8
        %s195 = scalar_lea.vmem [#allocation7], %s194
        %v196 = vld [vmem:[%s161] sm:$0xff]
        %v197 = vld [vmem:[%s170] sm:$0xff]
        %v198 = vlog2.pop %v196
        %v199 = vmul.f32 %v198, 0.6931472
        %v200 = vmax.f32 %v199, -100.0
        %v201 = vsub.f32 1.0, %v196
        %v202 = vlog2.pop %v201
        %v203 = vmul.f32 %v202, 0.6931472
        %v204 = vmax.f32 %v203, -100.0
        %vm205 = vcmp.gt.f32.partialorder %v197, 0.0
        %v206 = vsel %vm205, -1.7, -0.9
        %v207 = vmul.f32 %v206, %v197
        %v208 = vmul.f32 %v207, %v200
        %v209 = vsub.f32 %v206, %v207
        %v210 = vmul.f32 %v209, %v204
        %v211 = vadd.f32 %v208, %v210
        %v212 = vadd.f32 %v211, 0.0
        %v213 = vadd.f32 %v212, 0.0
        %214 = vst [vmem:[%s195] sm:$0xff] %v213
        %s215 = sand.u32 %s82, 1
        %s216 = scalar_lea.sflag [#allocation4], %s215
        %s217 = sand.u32 %s82, 1
        %s218 = smul.addr %s217, 8
        %s219 = scalar_lea.vmem [#allocation7], %s218
        // Predicated region
        $region37: #{tpu_custom_call.1} parent=27 // pred_check
          %p220 = pneg %p92
        $region38: #{tpu_custom_call.1} parent=27 // pred_check_branch
          %222 = sbr.rel (%p220) target = $region40
        $region39: #{tpu_custom_call.1} parent=27 // pred_region
          %s224 = ssub.s32 128, 128
          %225 = vsyncadd %s216, %s224
          %s226 = smul.addr %s22, 128
          %s227 = scalar_lea.hbm %s2, %s226
          %s229 = sshll.u32 %s219, 4
          %s230 = int_to_ptr.vmem [resolvable:$true] %s229
          %232 = dma.vmem_to_hbm [thread:$0]  %s230, 128, %s227, %s216
        $region40: #{tpu_custom_call.1} parent=27 // pred_fallthru
          _
      $region28: #{tpu_custom_call.1} parent=5 // pred_fallthru
        _
      %p233 = scmp.le.s32.totalorder 2, %s17
      // Predicated region
      $region41: #{tpu_custom_call.1} parent=5 // pred_check
        %p234 = pneg %p233
      $region42: #{tpu_custom_call.1} parent=5 // pred_check_branch
        %236 = sbr.rel (%p234) target = $region44
      $region43: #{tpu_custom_call.1} parent=5 // pred_region
        %s237 = ssub.s32 %s17, 2
        // Predicated region
        $region45: #{tpu_custom_call.1} parent=43 // pred_check
          %p238 = pneg %p98
        $region46: #{tpu_custom_call.1} parent=43 // pred_check_branch
          %240 = sbr.rel (%p238) target = $region48
        $region47: #{tpu_custom_call.1} parent=43 // pred_region
          %s241 = sand.u32 %s83, 1
          %s242 = scalar_lea.sflag [#allocation4], %s241
          %s243 = sand.u32 %s83, 1
          %s244 = smul.addr %s243, 8
          %s245 = scalar_lea.vmem [#allocation7], %s244
          %246 = dma.done %s242, 128
        $region48: #{tpu_custom_call.1} parent=43 // pred_fallthru
          _
      $region44: #{tpu_custom_call.1} parent=5 // pred_fallthru
        _
    $region6: #{tpu_custom_call.1} parent=1 // loop_footer
      %s21 = sadd.s32 1, %s17
    $region7: #{tpu_custom_call.1} parent=1 // loop_footer_branch
      %16 = sbr.rel target = $region3
    $region8: #{tpu_custom_call.1} parent=1 // loop_exit
      _
    %247 = vsyncpa [#allocation3], 1
    %s248 = scalar_lea.sflag [#allocation3], 1
    %249 = vsyncpa %s248, 1
    %250 = vsyncpa [#allocation6], 1
    %s251 = scalar_lea.sflag [#allocation6], 1
    %252 = vsyncpa %s251, 1
    %253 = vsyncpa [#allocation4], 1
    %s254 = scalar_lea.sflag [#allocation4], 1
    %255 = vsyncpa %s254, 1

</llo_original>
